<compile_context>
chip_gen: v7x
topology: tpu7x:2x2x1
jax: 0.10.0
libtpu: 0.0.40
codegen_flags: <defaults>
</compile_context>

<pallas_src>
import functools

import jax
import jax.numpy as jnp
from jax import lax
from jax.experimental import pallas as pl
from jax.experimental.pallas import tpu as pltpu

_LANE = 128
_SUBLANE = 8
_PAD_GRANULE = _LANE                     # only the lane dim must be 128

_SUPPORTED = (
    "relu", "relu6", "sigmoid", "hard_sigmoid",
    "hard_swish", "leakyrelu", "gelu", "swish",
)
_TRANSCENDENTAL = frozenset({"sigmoid", "gelu", "swish"})


def _tpu_generation_params():
    """Return (max_block_bytes, min_grid_steps, is_v5) tuned per TPU gen."""
    max_block_bytes = 2 * 1024 * 1024    # conservative default (v5e scoped VMEM)
    min_grid_steps = 1
    is_v5 = True
    try:
        kind = (getattr(jax.devices()[0], "device_kind", "") or "").lower()
        if ("v7" in kind) or ("7x" in kind):
            # 3.2 TB/s HBM: bigger blocks amortize the per-step overhead;
            # keep >=2 steps so the "parallel" axis shards across 2 TCs.
            max_block_bytes = 8 * 1024 * 1024
            min_grid_steps = 2
            is_v5 = False
        elif "v6" in kind:
            max_block_bytes = 4 * 1024 * 1024
            min_grid_steps = 1
            is_v5 = False
        else:
            max_block_bytes = 2 * 1024 * 1024
            min_grid_steps = 1
            is_v5 = "v5" in kind or kind == ""
    except Exception:
        pass
    return max_block_bytes, min_grid_steps, is_v5


def _apply_act(x, act_type):
    """Elementwise activation matching torch semantics."""
    if act_type == "relu":
        return jnp.maximum(x, 0.0)
    if act_type == "relu6":
        return jnp.clip(x, 0.0, 6.0)
    if act_type == "sigmoid":
        return jax.nn.sigmoid(x)
    if act_type == "hard_sigmoid":
        # torch.nn.Hardsigmoid: relu6(x + 3) / 6
        return jnp.clip(x + 3.0, 0.0, 6.0) * (1.0 / 6.0)
    if act_type == "hard_swish":
        # torch.nn.Hardswish: x * relu6(x + 3) / 6
        return x * jnp.clip(x + 3.0, 0.0, 6.0) * (1.0 / 6.0)
    if act_type == "leakyrelu":
        # torch.nn.LeakyReLU default negative_slope = 0.01
        return jnp.where(x >= 0.0, x, 0.01 * x)
    if act_type == "gelu":
        # torch.nn.functional.gelu default (approximate='none'): exact erf form
        return 0.5 * x * (1.0 + lax.erf(x * 0.7071067811865476))
    if act_type == "swish":
        return x * jax.nn.sigmoid(x)
    raise NotImplementedError(act_type)


def _activation_kernel(x_ref, o_ref, *, act_type, compute_f32):
    x = x_ref[...]
    if compute_f32 and jnp.issubdtype(x.dtype, jnp.floating) and x.dtype != jnp.float32:
        x = x.astype(jnp.float32)
    o_ref[...] = _apply_act(x, act_type).astype(o_ref.dtype)


def activation(x, act_type, inplace=False):
    """Pallas equivalent of Activation(act_type)(x).

    Set inplace=True only when the caller actually donates `x` (e.g. via
    jax.jit donate_argnums); otherwise XLA inserts a defensive copy.
    """
    act_type = act_type.lower()
    if act_type not in _SUPPORTED:
        raise NotImplementedError(act_type)

    orig_shape = x.shape
    orig_dtype = x.dtype
    n = x.size
    if n == 0:
        return x

    max_block_bytes, min_grid_steps, is_v5 = _tpu_generation_params()

    # Compute in f32 only where it matters: transcendental branches (EUP) or
    # on v5e, whose VPU/EUP have no sub-32-bit float path.
    compute_f32 = (act_type in _TRANSCENDENTAL) or is_v5

    # ---- wrapper-side layout: lane-dense (rows, 128) slab ------------------
    # Only the lane dim must be 128; a ragged row count is fine because the
    # block row tile is a multiple of 8 and Pallas masks the partial edge block.
    pad = (-n) % _PAD_GRANULE
    if pad == 0:
        slab = x.reshape(-1, _LANE)                  # free bitcast, no HBM pass
    else:
        # TODO(synk): for truly unaligned sizes, process the 128-aligned prefix
        # in the kernel and the <128-element tail separately to avoid the
        # pad + slice round trips (2 extra HBM passes).
        flat = jnp.ravel(x)
        flat = jnp.pad(flat, (0, pad))
        slab = flat.reshape(-1, _LANE)
    rows = slab.shape[0]

    # ---- choose row tile ----------------------------------------------------
    itemsize = jnp.dtype(orig_dtype).itemsize
    max_rows = max(_SUBLANE, max_block_bytes // (_LANE * itemsize))
    max_rows = (max_rows // _SUBLANE) * _SUBLANE
    if min_grid_steps > 1:
        target_rows = pl.cdiv(rows, min_grid_steps)
        target_rows = pl.cdiv(target_rows, _SUBLANE) * _SUBLANE
        row_tile = min(max_rows, max(_SUBLANE, target_rows))
    else:
        row_tile = max_rows
    row_tile = min(row_tile, rows)        # full-array block if array is small
    grid = (pl.cdiv(rows, row_tile),)

    block_bytes = row_tile * _LANE * itemsize
    # in + out, double-buffered, plus a small margin.
    vmem_limit = min(max(4 * block_bytes + (2 << 20), 16 << 20), 48 << 20)

    out_slab = pl.pallas_call(
        functools.partial(_activation_kernel, act_type=act_type,
                          compute_f32=compute_f32),
        out_shape=jax.ShapeDtypeStruct(slab.shape, orig_dtype),
        grid=grid,
        in_specs=[pl.BlockSpec((row_tile, _LANE), lambda i: (i, 0))],
        out_specs=pl.BlockSpec((row_tile, _LANE), lambda i: (i, 0)),
        input_output_aliases={0: 0} if (inplace and pad == 0) else {},
        compiler_params=pltpu.CompilerParams(
            dimension_semantics=("parallel",),
            vmem_limit_bytes=int(vmem_limit)),
    )(slab)

    if pad == 0:
        return out_slab.reshape(orig_shape)
    return out_slab.reshape(-1)[:n].reshape(orig_shape)


def _reference(x, act_type):
    return _apply_act(x.astype(jnp.float32), act_type).astype(x.dtype)


if __name__ == "__main__":
    key = jax.random.PRNGKey(0)
    # NCHW input, small shape consistent with a conv feature map.
    x = jax.random.normal(key, (2, 4, 16, 16), dtype=jnp.float32) * 3.0

    ok = True
    for act_type in _SUPPORTED:
        out = jax.block_until_ready(activation(x, act_type))
        ref = _reference(x, act_type)
        if out.shape != x.shape or out.dtype != x.dtype:
            ok = False
            print(f"shape/dtype mismatch for {act_type}")
            continue
        err = float(jnp.max(jnp.abs(out - ref)))
        if err > 1e-5:
            ok = False
            print(f"mismatch for {act_type}: max abs err {err}")

    # Shape that is NOT a multiple of 128 elements (pad/slice fallback path).
    x2 = jax.random.normal(jax.random.PRNGKey(1), (3, 5, 7, 9), dtype=jnp.float32)
    out2 = jax.block_until_ready(activation(x2, "hard_swish"))
    err2 = float(jnp.max(jnp.abs(out2 - _reference(x2, "hard_swish"))))
    if out2.shape != x2.shape or err2 > 1e-5:
        ok = False
        print(f"mismatch for padded path: max abs err {err2}")

    # bf16 inputs: native-dtype relu path and f32-upcast swish path.
    x3 = (jax.random.normal(jax.random.PRNGKey(2), (2, 4, 16, 16),
                            dtype=jnp.float32) * 3.0).astype(jnp.bfloat16)
    for act_type in ("relu", "swish"):
        out3 = jax.block_until_ready(activation(x3, act_type))
        ref3 = _reference(x3, act_type)
        err3 = float(jnp.max(jnp.abs(
            out3.astype(jnp.float32) - ref3.astype(jnp.float32))))
        # ~1 bf16 ulp tolerance for compute-dtype differences.
        if out3.shape != x3.shape or out3.dtype != x3.dtype or err3 > 3e-2:
            ok = False
            print(f"mismatch for bf16 {act_type}: max abs err {err3}")

    if ok:
        print("KERNEL_OK")
</pallas_src>

<mosaic_0001>
module attributes {stable_mosaic.version = 11 : i64} {
  func.func @_activation_kernel(%arg0: i32, %arg1: memref<16x128xf32, #tpu.memory_space<vmem>>, %arg2: memref<16x128xf32, #tpu.memory_space<vmem>>) attributes {dimension_semantics = [#tpu.dimension_semantics<parallel>], iteration_bounds = array<i64: 1>, scalar_prefetch = 0 : i64, scratch_operands = 0 : i64, tpu.core_type = #tpu.core_type<tc>, window_params = [{transform_indices = @transform_0, window_bounds = array<i64: 16, 128>}, {transform_indices = @transform_1, window_bounds = array<i64: 16, 128>}]} {
    %c0 = arith.constant 0 : index
    %c0_0 = arith.constant 0 : index
    %0 = vector.load %arg1[%c0, %c0_0] : memref<16x128xf32, #tpu.memory_space<vmem>>, vector<16x128xf32>
    %cst = arith.constant 0.000000e+00 : f32
    %1 = vector.broadcast %cst : f32 to vector<16x128xf32>
    %2 = arith.maximumf %0, %1 : vector<16x128xf32>
    %c0_1 = arith.constant 0 : index
    %c0_2 = arith.constant 0 : index
    %3 = vector.load %arg2[%c0_1, %c0_2] : memref<16x128xf32, #tpu.memory_space<vmem>>, vector<16x128xf32>
    tpu.vector_store %arg2[%c0_1, %c0_2], %2 {strides = array<i32>} : memref<16x128xf32, #tpu.memory_space<vmem>>, vector<16x128xf32>,
    return
  }
  func.func @transform_0(%arg0: i32) -> (i32, i32) {
    %c0_i32 = arith.constant 0 : i32
    %c0_i32_0 = arith.constant 0 : i32
    return %arg0, %c0_i32 : i32, i32
  }
  func.func @transform_1(%arg0: i32) -> (i32, i32) {
    %c0_i32 = arith.constant 0 : i32
    %c0_i32_0 = arith.constant 0 : i32
    return %arg0, %c0_i32 : i32, i32
  }
}

</mosaic_0001>

<llo_original>
// kernel: tpu_custom_call.1
$region0: #{tpu_custom_call.1}
  #allocation0 [shape = 'u32[]', space=smem, size = 0x4, offset = 0x4, fixed_abs, tag = 'smem constant byte address 0x4 - core index']
  #allocation1 [shape = 'u32[144,128]{1,0:T(1,128)}', space=vmem, size = 0x12000, scoped, tag = 'internal scratch']
  %s0 = inlined_call_operand.hbm [shape: f32[16,128], index: 0, kind: input, shape index: {}]
  %s1 = inlined_call_operand.hbm [shape: f32[16,128], index: 1, kind: output, shape index: {}]
  %s2 = sld [smem:[#allocation0]]
  $region18: #{tpu_custom_call.1} parent=0
    _
  %s4 = ssub.s32 1, %s2
  %s5 = scalar_select 0, %s4, %s2
  $region1: #{tpu_custom_call.1} parent=0
    #allocation2 [shape = 'u8[8192]{0}', space=vmem, size = 0x2000, scoped, tag = 'input window, operand 0, single buffered']
    #allocation3 [shape = 's32[1]{0}', space=sflag, size = 0x4, scoped, tag = 'scoped memory for tpu_custom_call.1']
    #allocation4 [shape = 's32[1]{0}', space=sflag, size = 0x4, scoped, tag = 'scoped memory for tpu_custom_call.1']
    #allocation5 [shape = 'u8[8192]{0}', space=vmem, size = 0x2000, scoped, tag = 'output window, operand 0, single buffered']
    %6 = vsyncpa [#allocation3], 0
    %7 = vsyncpa [#allocation4], 0
    // Predicated region
    $region2: #{tpu_custom_call.1} parent=1 // pred_check
      _
    $region3: #{tpu_custom_call.1} parent=1 // pred_check_branch
      %9 = sbr.rel (0) target = $region5
    $region4: #{tpu_custom_call.1} parent=1 // pred_region
      %s11 = ssub.s32 256, 256
      %12 = vsyncadd [#allocation3], %s11
      %s13 = sshll.u32 [#allocation2], 4
      %s14 = int_to_ptr.vmem [resolvable:$true] %s13
      %19 = dma.hbm_to_vmem [thread:$0]  %s0, 256, %s14, [#allocation3], 128, 128, 8
    $region5: #{tpu_custom_call.1} parent=1 // pred_fallthru
      _
    // Predicated region
    $region6: #{tpu_custom_call.1} parent=1 // pred_check
      _
    $region7: #{tpu_custom_call.1} parent=1 // pred_check_branch
      %21 = sbr.rel (0) target = $region9
    $region8: #{tpu_custom_call.1} parent=1 // pred_region
      %22 = dma.done [#allocation3], 256
    $region9: #{tpu_custom_call.1} parent=1 // pred_fallthru
      _
    %v23 = vld [vmem:[#allocation2] sm:$0xff]
    %v24 = vld [vmem:[#allocation2 + $0x8] sm:$0xff]
    %v25 = vmax.f32 %v23, 0.0
    %v26 = vmax.f32 %v24, 0.0
    %27 = vst [vmem:[#allocation5] sm:$0xff] %v25
    %28 = vst [vmem:[#allocation5 + $0x8] sm:$0xff] %v26
    // Predicated region
    $region10: #{tpu_custom_call.1} parent=1 // pred_check
      _
    $region11: #{tpu_custom_call.1} parent=1 // pred_check_branch
      %30 = sbr.rel (0) target = $region13
    $region12: #{tpu_custom_call.1} parent=1 // pred_region
      %s32 = ssub.s32 256, 256
      %33 = vsyncadd [#allocation4], %s32
      %s34 = sshll.u32 [#allocation5], 4
      %s35 = int_to_ptr.vmem [resolvable:$true] %s34
      %40 = dma.vmem_to_hbm [thread:$0]  %s35, 256, %s1, [#allocation4], 128, 128, 8
    $region13: #{tpu_custom_call.1} parent=1 // pred_fallthru
      _
    // Predicated region
    $region14: #{tpu_custom_call.1} parent=1 // pred_check
      _
    $region15: #{tpu_custom_call.1} parent=1 // pred_check_branch
      %42 = sbr.rel (0) target = $region17
    $region16: #{tpu_custom_call.1} parent=1 // pred_region
      %43 = dma.done [#allocation4], 256
    $region17: #{tpu_custom_call.1} parent=1 // pred_fallthru
      _
    %44 = vsyncpa [#allocation3], 1
    %45 = vsyncpa [#allocation4], 1

</llo_original>
